<compile_context>
chip_gen: v7x
topology: tpu7x:2x2x1
jax: 0.10.0
libtpu: 0.0.40
codegen_flags: <defaults>
</compile_context>

<pallas_src>
import functools

import jax
import jax.numpy as jnp
from jax import lax
from jax.experimental import pallas as pl
from jax.experimental.pallas import tpu as pltpu


def _round_up(n, m):
    return ((n + m - 1) // m) * m


def _mlp_kernel(x_ref,
                w1_ref, b1_ref, w2_ref, b2_ref, w3_ref, b3_ref,
                w4_ref, b4_ref, w5_ref, b5_ref,
                oT_ref):
    """Fused 5-layer MLP on one batch tile.

    x_ref : (TILE_B, in_features) f32   -- batch-major (no wrapper transpose)
    oT_ref: (out_features, TILE_B) f32  -- feature-major, lane-dense store
    Weights in PyTorch (out, in) layout, bf16; biases (out, 1) f32.
    """

    def dense(w_ref, b_ref, h_bf16, relu):
        # bf16 x bf16 on the MXU with f32 accumulation; bias (+ReLU) in f32 on
        # the VPU.  ReLU layers hand bf16 straight to the next layer, halving
        # the live activation footprint (same rounding order as the reference).
        a = jnp.dot(w_ref[...], h_bf16, preferred_element_type=jnp.float32)
        a = a + b_ref[...]
        if relu:
            return jnp.maximum(a, 0.0).astype(jnp.bfloat16)
        return a

    x = x_ref[...].astype(jnp.bfloat16)                    # (TILE_B, in)
    # Layer 1: contract the shared in_features axis of W1:(hidden,in) with the
    # batch-major x tile:(TILE_B,in) -> (hidden, TILE_B).  From here on the
    # batch sits on the lane dimension, so later matmuls, bias broadcasts and
    # the final store are all lane-dense; no explicit transpose needed.
    a1 = lax.dot_general(w1_ref[...], x,
                         dimension_numbers=(((1,), (1,)), ((), ())),
                         preferred_element_type=jnp.float32)
    h = jnp.maximum(a1 + b1_ref[...], 0.0).astype(jnp.bfloat16)
    h = dense(w2_ref, b2_ref, h, True)
    h = dense(w3_ref, b3_ref, h, True)
    h = dense(w4_ref, b4_ref, h, True)
    y = dense(w5_ref, b5_ref, h, False)                    # (out, TILE_B) f32
    oT_ref[...] = y.astype(oT_ref.dtype)


@functools.partial(jax.jit, static_argnames=("tile_b",))
def neural_network_forward(x, params, *, tile_b=4096):
    """x: (B, in_features) f32.  params: 5 x (W bf16 (out,in), b f32 (out,1))."""
    B, in_features = x.shape
    hidden = params[0][0].shape[0]
    out_features = params[-1][0].shape[0]

    # Batch tile: multiple of 128 lanes, big enough to amortize the ~0.35us
    # per-grid-step pipeline overhead, capped so moderate batches still yield
    # >=2 grid steps (both v7x TensorCores get work).  No jnp.pad: the ragged
    # last block is handled by Pallas (OOB columns discarded on store).
    tile_b = max(128, min(tile_b, _round_up(pl.cdiv(B, 2), 128)))
    grid_b = pl.cdiv(B, tile_b)

    def _resident(a):
        # Whole-array block with a constant index_map -> DMA'd once, stays
        # VMEM-resident across every batch tile.
        return pl.BlockSpec(a.shape, lambda i: (0, 0))

    in_specs = [pl.BlockSpec((tile_b, in_features), lambda i: (i, 0))]
    flat_args = [x]
    for w, b in params:
        in_specs.append(_resident(w))
        in_specs.append(_resident(b))
        flat_args.extend([w, b])
    out_spec = pl.BlockSpec((out_features, tile_b), lambda i: (0, i))

    weight_bytes = sum(w.size * w.dtype.itemsize + b.size * b.dtype.itemsize
                       for w, b in params)
    flops = 2 * B * (in_features * hidden + 3 * hidden * hidden
                     + hidden * out_features)
    bytes_accessed = (B * in_features * 4 + B * out_features * 4 + weight_bytes)

    oT = pl.pallas_call(
        _mlp_kernel,
        out_shape=jax.ShapeDtypeStruct((out_features, B), jnp.float32),
        grid=(grid_b,),
        in_specs=in_specs,
        out_specs=out_spec,
        compiler_params=pltpu.CompilerParams(
            dimension_semantics=("parallel",),       # megacore-friendly on v7x
            vmem_limit_bytes=32 * 1024 * 1024,       # safe on v5e/v6e/v7x
        ),
        cost_estimate=pl.CostEstimate(
            flops=flops, transcendentals=0, bytes_accessed=bytes_accessed),
    )(*flat_args)

    # Back to the PyTorch (B, out_features) layout.  Keeping the in-kernel
    # store feature-major/lane-dense (16-wide store would be a masked vst);
    # this small (16, B) transpose is cheap relative to that penalty.
    return jnp.transpose(oT)


def init_params(key, input_features, output_features, hidden_units=64):
    """nn.Linear-style init. W stored in PyTorch (out,in) layout, bf16; b (out,1) f32."""
    dims = [input_features] + [hidden_units] * 4 + [output_features]
    params = []
    for i in range(5):
        fan_in, fan_out = dims[i], dims[i + 1]
        key, kw, kb = jax.random.split(key, 3)
        bound = 1.0 / jnp.sqrt(fan_in)
        w = jax.random.uniform(kw, (fan_out, fan_in), jnp.float32, -bound, bound)
        b = jax.random.uniform(kb, (fan_out, 1), jnp.float32, -bound, bound)
        params.append((w.astype(jnp.bfloat16), b))
    return params


def reference_forward(x, params):
    """Plain-JAX reference mirroring the kernel's precision (bf16 MXU, f32 acc)."""
    h = x
    n = len(params)
    for i, (w, b) in enumerate(params):
        a = jnp.dot(h.astype(jnp.bfloat16), jnp.transpose(w),
                    preferred_element_type=jnp.float32) + b[:, 0]
        h = jnp.maximum(a, 0.0) if i < n - 1 else a
    return h


if __name__ == "__main__":
    key = jax.random.PRNGKey(0)
    k_x, k_p = jax.random.split(key)

    batch, in_f, out_f, hidden = 8, 32, 16, 64
    params = init_params(k_p, in_f, out_f, hidden)

    # Small case: single (ragged) tile, no wrapper-side transpose/pad.
    x = jax.random.normal(k_x, (batch, in_f), jnp.float32)
    out = jax.block_until_ready(neural_network_forward(x, params))
    ref = reference_forward(x, params)
    assert out.shape == (batch, out_f)
    assert jnp.allclose(out, ref, atol=5e-3, rtol=5e-3), "mismatch vs reference (small)"

    # Larger case: multi-tile grid (grid=(2,)) with a ragged last block.
    x_big = jax.random.normal(k_x, (1000, in_f), jnp.float32)
    out_big = jax.block_until_ready(neural_network_forward(x_big, params))
    ref_big = reference_forward(x_big, params)
    assert out_big.shape == (1000, out_f)
    assert jnp.allclose(out_big, ref_big, atol=5e-3, rtol=5e-3), "mismatch vs reference (tiled)"

    print("KERNEL_OK")
</pallas_src>

<mosaic_0001>
module attributes {stable_mosaic.version = 11 : i64} {
  func.func @_mlp_kernel(%arg0: i32, %arg1: memref<128x32xf32, #tpu.memory_space<vmem>>, %arg2: memref<64x32xbf16, #tpu.memory_space<vmem>>, %arg3: memref<64x1xf32, #tpu.memory_space<vmem>>, %arg4: memref<64x64xbf16, #tpu.memory_space<vmem>>, %arg5: memref<64x1xf32, #tpu.memory_space<vmem>>, %arg6: memref<64x64xbf16, #tpu.memory_space<vmem>>, %arg7: memref<64x1xf32, #tpu.memory_space<vmem>>, %arg8: memref<64x64xbf16, #tpu.memory_space<vmem>>, %arg9: memref<64x1xf32, #tpu.memory_space<vmem>>, %arg10: memref<16x64xbf16, #tpu.memory_space<vmem>>, %arg11: memref<16x1xf32, #tpu.memory_space<vmem>>, %arg12: memref<16x128xf32, #tpu.memory_space<vmem>>) attributes {dimension_semantics = [#tpu.dimension_semantics<parallel>], iteration_bounds = array<i64: 1>, scalar_prefetch = 0 : i64, scratch_operands = 0 : i64, tpu.core_type = #tpu.core_type<tc>, window_params = [{transform_indices = @transform_0, window_bounds = array<i64: 128, 32>}, {pipeline_mode = #tpu.pipeline_mode<synchronous>, transform_indices = @transform_1, window_bounds = array<i64: 64, 32>}, {pipeline_mode = #tpu.pipeline_mode<synchronous>, transform_indices = @transform_2, window_bounds = array<i64: 64, 1>}, {pipeline_mode = #tpu.pipeline_mode<synchronous>, transform_indices = @transform_3, window_bounds = array<i64: 64, 64>}, {pipeline_mode = #tpu.pipeline_mode<synchronous>, transform_indices = @transform_4, window_bounds = array<i64: 64, 1>}, {pipeline_mode = #tpu.pipeline_mode<synchronous>, transform_indices = @transform_5, window_bounds = array<i64: 64, 64>}, {pipeline_mode = #tpu.pipeline_mode<synchronous>, transform_indices = @transform_6, window_bounds = array<i64: 64, 1>}, {pipeline_mode = #tpu.pipeline_mode<synchronous>, transform_indices = @transform_7, window_bounds = array<i64: 64, 64>}, {pipeline_mode = #tpu.pipeline_mode<synchronous>, transform_indices = @transform_8, window_bounds = array<i64: 64, 1>}, {pipeline_mode = #tpu.pipeline_mode<synchronous>, transform_indices = @transform_9, window_bounds = array<i64: 16, 64>}, {pipeline_mode = #tpu.pipeline_mode<synchronous>, transform_indices = @transform_10, window_bounds = array<i64: 16, 1>}, {transform_indices = @transform_11, window_bounds = array<i64: 16, 128>}]} {
    %c0 = arith.constant 0 : index
    %c0_0 = arith.constant 0 : index
    %0 = vector.load %arg1[%c0, %c0_0] : memref<128x32xf32, #tpu.memory_space<vmem>>, vector<128x32xf32>
    %1 = arith.truncf %0 : vector<128x32xf32> to vector<128x32xbf16>
    %c0_1 = arith.constant 0 : index
    %c0_2 = arith.constant 0 : index
    %2 = vector.load %arg2[%c0_1, %c0_2] : memref<64x32xbf16, #tpu.memory_space<vmem>>, vector<64x32xbf16>
    %cst = arith.constant dense<0.000000e+00> : vector<64x128xf32>
    %3 = tpu.matmul %2, %1, %cst {dimension_numbers = #tpu.dot_dimension_numbers<[1], [1], [0], [0], [0, 0, 1, 0], [], []>} : vector<64x32xbf16>, vector<128x32xbf16>, vector<64x128xf32> -> vector<64x128xf32>
    %c0_3 = arith.constant 0 : index
    %c0_4 = arith.constant 0 : index
    %4 = vector.load %arg3[%c0_3, %c0_4] : memref<64x1xf32, #tpu.memory_space<vmem>>, vector<64x1xf32>
    %5 = vector.broadcast %4 : vector<64x1xf32> to vector<64x128xf32>
    %6 = arith.addf %3, %5 : vector<64x128xf32>
    %cst_5 = arith.constant 0.000000e+00 : f32
    %7 = vector.broadcast %cst_5 : f32 to vector<64x128xf32>
    %8 = arith.maximumf %6, %7 : vector<64x128xf32>
    %9 = arith.truncf %8 : vector<64x128xf32> to vector<64x128xbf16>
    %c0_6 = arith.constant 0 : index
    %c0_7 = arith.constant 0 : index
    %10 = vector.load %arg4[%c0_6, %c0_7] : memref<64x64xbf16, #tpu.memory_space<vmem>>, vector<64x64xbf16>
    %cst_8 = arith.constant dense<0.000000e+00> : vector<64x128xf32>
    %11 = tpu.matmul %10, %9, %cst_8 {dimension_numbers = #tpu.dot_dimension_numbers<[1], [0], [0], [1], [0, 0, 1, 1], [], []>} : vector<64x64xbf16>, vector<64x128xbf16>, vector<64x128xf32> -> vector<64x128xf32>
    %c0_9 = arith.constant 0 : index
    %c0_10 = arith.constant 0 : index
    %12 = vector.load %arg5[%c0_9, %c0_10] : memref<64x1xf32, #tpu.memory_space<vmem>>, vector<64x1xf32>
    %13 = vector.broadcast %12 : vector<64x1xf32> to vector<64x128xf32>
    %14 = arith.addf %11, %13 : vector<64x128xf32>
    %cst_11 = arith.constant 0.000000e+00 : f32
    %15 = vector.broadcast %cst_11 : f32 to vector<64x128xf32>
    %16 = arith.maximumf %14, %15 : vector<64x128xf32>
    %17 = arith.truncf %16 : vector<64x128xf32> to vector<64x128xbf16>
    %c0_12 = arith.constant 0 : index
    %c0_13 = arith.constant 0 : index
    %18 = vector.load %arg6[%c0_12, %c0_13] : memref<64x64xbf16, #tpu.memory_space<vmem>>, vector<64x64xbf16>
    %cst_14 = arith.constant dense<0.000000e+00> : vector<64x128xf32>
    %19 = tpu.matmul %18, %17, %cst_14 {dimension_numbers = #tpu.dot_dimension_numbers<[1], [0], [0], [1], [0, 0, 1, 1], [], []>} : vector<64x64xbf16>, vector<64x128xbf16>, vector<64x128xf32> -> vector<64x128xf32>
    %c0_15 = arith.constant 0 : index
    %c0_16 = arith.constant 0 : index
    %20 = vector.load %arg7[%c0_15, %c0_16] : memref<64x1xf32, #tpu.memory_space<vmem>>, vector<64x1xf32>
    %21 = vector.broadcast %20 : vector<64x1xf32> to vector<64x128xf32>
    %22 = arith.addf %19, %21 : vector<64x128xf32>
    %cst_17 = arith.constant 0.000000e+00 : f32
    %23 = vector.broadcast %cst_17 : f32 to vector<64x128xf32>
    %24 = arith.maximumf %22, %23 : vector<64x128xf32>
    %25 = arith.truncf %24 : vector<64x128xf32> to vector<64x128xbf16>
    %c0_18 = arith.constant 0 : index
    %c0_19 = arith.constant 0 : index
    %26 = vector.load %arg8[%c0_18, %c0_19] : memref<64x64xbf16, #tpu.memory_space<vmem>>, vector<64x64xbf16>
    %cst_20 = arith.constant dense<0.000000e+00> : vector<64x128xf32>
    %27 = tpu.matmul %26, %25, %cst_20 {dimension_numbers = #tpu.dot_dimension_numbers<[1], [0], [0], [1], [0, 0, 1, 1], [], []>} : vector<64x64xbf16>, vector<64x128xbf16>, vector<64x128xf32> -> vector<64x128xf32>
    %c0_21 = arith.constant 0 : index
    %c0_22 = arith.constant 0 : index
    %28 = vector.load %arg9[%c0_21, %c0_22] : memref<64x1xf32, #tpu.memory_space<vmem>>, vector<64x1xf32>
    %29 = vector.broadcast %28 : vector<64x1xf32> to vector<64x128xf32>
    %30 = arith.addf %27, %29 : vector<64x128xf32>
    %cst_23 = arith.constant 0.000000e+00 : f32
    %31 = vector.broadcast %cst_23 : f32 to vector<64x128xf32>
    %32 = arith.maximumf %30, %31 : vector<64x128xf32>
    %33 = arith.truncf %32 : vector<64x128xf32> to vector<64x128xbf16>
    %c0_24 = arith.constant 0 : index
    %c0_25 = arith.constant 0 : index
    %34 = vector.load %arg10[%c0_24, %c0_25] : memref<16x64xbf16, #tpu.memory_space<vmem>>, vector<16x64xbf16>
    %cst_26 = arith.constant dense<0.000000e+00> : vector<16x128xf32>
    %35 = tpu.matmul %34, %33, %cst_26 {dimension_numbers = #tpu.dot_dimension_numbers<[1], [0], [0], [1], [0, 0, 1, 1], [], []>} : vector<16x64xbf16>, vector<64x128xbf16>, vector<16x128xf32> -> vector<16x128xf32>
    %c0_27 = arith.constant 0 : index
    %c0_28 = arith.constant 0 : index
    %36 = vector.load %arg11[%c0_27, %c0_28] : memref<16x1xf32, #tpu.memory_space<vmem>>, vector<16x1xf32>
    %37 = vector.broadcast %36 : vector<16x1xf32> to vector<16x128xf32>
    %38 = arith.addf %35, %37 : vector<16x128xf32>
    %c0_29 = arith.constant 0 : index
    %c0_30 = arith.constant 0 : index
    %39 = vector.load %arg12[%c0_29, %c0_30] : memref<16x128xf32, #tpu.memory_space<vmem>>, vector<16x128xf32>
    tpu.vector_store %arg12[%c0_29, %c0_30], %38 {strides = array<i32>} : memref<16x128xf32, #tpu.memory_space<vmem>>, vector<16x128xf32>,
    return
  }
  func.func @transform_0(%arg0: i32) -> (i32, i32) {
    %c0_i32 = arith.constant 0 : i32
    %c0_i32_0 = arith.constant 0 : i32
    return %arg0, %c0_i32 : i32, i32
  }
  func.func @transform_1(%arg0: i32) -> (i32, i32) {
    %c0_i32 = arith.constant 0 : i32
    %c0_i32_0 = arith.constant 0 : i32
    %c0_i32_1 = arith.constant 0 : i32
    return %c0_i32, %c0_i32_0 : i32, i32
  }
  func.func @transform_2(%arg0: i32) -> (i32, i32) {
    %c0_i32 = arith.constant 0 : i32
    %c0_i32_0 = arith.constant 0 : i32
    %c0_i32_1 = arith.constant 0 : i32
    return %c0_i32, %c0_i32_0 : i32, i32
  }
  func.func @transform_3(%arg0: i32) -> (i32, i32) {
    %c0_i32 = arith.constant 0 : i32
    %c0_i32_0 = arith.constant 0 : i32
    %c0_i32_1 = arith.constant 0 : i32
    return %c0_i32, %c0_i32_0 : i32, i32
  }
  func.func @transform_4(%arg0: i32) -> (i32, i32) {
    %c0_i32 = arith.constant 0 : i32
    %c0_i32_0 = arith.constant 0 : i32
    %c0_i32_1 = arith.constant 0 : i32
    return %c0_i32, %c0_i32_0 : i32, i32
  }
  func.func @transform_5(%arg0: i32) -> (i32, i32) {
    %c0_i32 = arith.constant 0 : i32
    %c0_i32_0 = arith.constant 0 : i32
    %c0_i32_1 = arith.constant 0 : i32
    return %c0_i32, %c0_i32_0 : i32, i32
  }
  func.func @transform_6(%arg0: i32) -> (i32, i32) {
    %c0_i32 = arith.constant 0 : i32
    %c0_i32_0 = arith.constant 0 : i32
    %c0_i32_1 = arith.constant 0 : i32
    return %c0_i32, %c0_i32_0 : i32, i32
  }
  func.func @transform_7(%arg0: i32) -> (i32, i32) {
    %c0_i32 = arith.constant 0 : i32
    %c0_i32_0 = arith.constant 0 : i32
    %c0_i32_1 = arith.constant 0 : i32
    return %c0_i32, %c0_i32_0 : i32, i32
  }
  func.func @transform_8(%arg0: i32) -> (i32, i32) {
    %c0_i32 = arith.constant 0 : i32
    %c0_i32_0 = arith.constant 0 : i32
    %c0_i32_1 = arith.constant 0 : i32
    return %c0_i32, %c0_i32_0 : i32, i32
  }
  func.func @transform_9(%arg0: i32) -> (i32, i32) {
    %c0_i32 = arith.constant 0 : i32
    %c0_i32_0 = arith.constant 0 : i32
    %c0_i32_1 = arith.constant 0 : i32
    return %c0_i32, %c0_i32_0 : i32, i32
  }
  func.func @transform_10(%arg0: i32) -> (i32, i32) {
    %c0_i32 = arith.constant 0 : i32
    %c0_i32_0 = arith.constant 0 : i32
    %c0_i32_1 = arith.constant 0 : i32
    return %c0_i32, %c0_i32_0 : i32, i32
  }
  func.func @transform_11(%arg0: i32) -> (i32, i32) {
    %c0_i32 = arith.constant 0 : i32
    %c0_i32_0 = arith.constant 0 : i32
    return %c0_i32, %arg0 : i32, i32
  }
}

</mosaic_0001>

<llo_original>
// kernel: neural_network_forward.1
$region0: #{neural_network_forward.1}
  #allocation0 [shape = 'u32[]', space=smem, size = 0x4, offset = 0x4, fixed_abs, tag = 'smem constant byte address 0x4 - core index']
  #allocation1 [shape = 'u32[144,128]{1,0:T(1,128)}', space=vmem, size = 0x12000, scoped, tag = 'internal scratch']
  %s0 = inlined_call_operand.vmem [shape: f32[8,32], index: 0, kind: input, shape index: {}]
  %s1 = inlined_call_operand.vmem [shape: bf16[64,32], index: 1, kind: input, shape index: {}]
  %s2 = inlined_call_operand.vmem [shape: f32[64,1], index: 2, kind: input, shape index: {}]
  %s3 = inlined_call_operand.vmem [shape: bf16[64,64], index: 3, kind: input, shape index: {}]
  %s4 = inlined_call_operand.vmem [shape: f32[64,1], index: 4, kind: input, shape index: {}]
  %s5 = inlined_call_operand.vmem [shape: bf16[64,64], index: 5, kind: input, shape index: {}]
  %s6 = inlined_call_operand.vmem [shape: f32[64,1], index: 6, kind: input, shape index: {}]
  %s7 = inlined_call_operand.vmem [shape: bf16[64,64], index: 7, kind: input, shape index: {}]
  %s8 = inlined_call_operand.vmem [shape: f32[64,1], index: 8, kind: input, shape index: {}]
  %s9 = inlined_call_operand.vmem [shape: bf16[16,64], index: 9, kind: input, shape index: {}]
  %s10 = inlined_call_operand.vmem [shape: f32[16,1], index: 10, kind: input, shape index: {}]
  %s11 = inlined_call_operand.vmem [shape: f32[16,8], index: 11, kind: output, shape index: {}]
  %s12 = sld [smem:[#allocation0]]
  $region54: #{neural_network_forward.1} parent=0
    _
  %s14 = ssub.s32 1, %s12
  %s15 = scalar_select 0, %s14, %s12
  // Predicated region
  $region2: #{neural_network_forward.1} parent=0 // pred_check
    _
  $region3: #{neural_network_forward.1} parent=0 // pred_check_branch
    %17 = sbr.rel (0) target = $region5
  $region4: #{neural_network_forward.1} parent=0 // pred_region
    _
  $region5: #{neural_network_forward.1} parent=0 // pred_fallthru
    _
  // Predicated region
  $region6: #{neural_network_forward.1} parent=0 // pred_check
    _
  $region7: #{neural_network_forward.1} parent=0 // pred_check_branch
    %19 = sbr.rel (0) target = $region9
  $region8: #{neural_network_forward.1} parent=0 // pred_region
    _
  $region9: #{neural_network_forward.1} parent=0 // pred_fallthru
    _
  // Predicated region
  $region10: #{neural_network_forward.1} parent=0 // pred_check
    _
  $region11: #{neural_network_forward.1} parent=0 // pred_check_branch
    %21 = sbr.rel (0) target = $region13
  $region12: #{neural_network_forward.1} parent=0 // pred_region
    _
  $region13: #{neural_network_forward.1} parent=0 // pred_fallthru
    _
  // Predicated region
  $region14: #{neural_network_forward.1} parent=0 // pred_check
    _
  $region15: #{neural_network_forward.1} parent=0 // pred_check_branch
    %23 = sbr.rel (0) target = $region17
  $region16: #{neural_network_forward.1} parent=0 // pred_region
    _
  $region17: #{neural_network_forward.1} parent=0 // pred_fallthru
    _
  // Predicated region
  $region18: #{neural_network_forward.1} parent=0 // pred_check
    _
  $region19: #{neural_network_forward.1} parent=0 // pred_check_branch
    %25 = sbr.rel (0) target = $region21
  $region20: #{neural_network_forward.1} parent=0 // pred_region
    _
  $region21: #{neural_network_forward.1} parent=0 // pred_fallthru
    _
  // Predicated region
  $region22: #{neural_network_forward.1} parent=0 // pred_check
    _
  $region23: #{neural_network_forward.1} parent=0 // pred_check_branch
    %27 = sbr.rel (0) target = $region25
  $region24: #{neural_network_forward.1} parent=0 // pred_region
    _
  $region25: #{neural_network_forward.1} parent=0 // pred_fallthru
    _
  // Predicated region
  $region26: #{neural_network_forward.1} parent=0 // pred_check
    _
  $region27: #{neural_network_forward.1} parent=0 // pred_check_branch
    %29 = sbr.rel (0) target = $region29
  $region28: #{neural_network_forward.1} parent=0 // pred_region
    _
  $region29: #{neural_network_forward.1} parent=0 // pred_fallthru
    _
  // Predicated region
  $region30: #{neural_network_forward.1} parent=0 // pred_check
    _
  $region31: #{neural_network_forward.1} parent=0 // pred_check_branch
    %31 = sbr.rel (0) target = $region33
  $region32: #{neural_network_forward.1} parent=0 // pred_region
    _
  $region33: #{neural_network_forward.1} parent=0 // pred_fallthru
    _
  // Predicated region
  $region34: #{neural_network_forward.1} parent=0 // pred_check
    _
  $region35: #{neural_network_forward.1} parent=0 // pred_check_branch
    %33 = sbr.rel (0) target = $region37
  $region36: #{neural_network_forward.1} parent=0 // pred_region
    _
  $region37: #{neural_network_forward.1} parent=0 // pred_fallthru
    _
  // Predicated region
  $region38: #{neural_network_forward.1} parent=0 // pred_check
    _
  $region39: #{neural_network_forward.1} parent=0 // pred_check_branch
    %35 = sbr.rel (0) target = $region41
  $region40: #{neural_network_forward.1} parent=0 // pred_region
    _
  $region41: #{neural_network_forward.1} parent=0 // pred_fallthru
    _
  // Predicated region
  $region42: #{neural_network_forward.1} parent=0 // pred_check
    _
  $region43: #{neural_network_forward.1} parent=0 // pred_check_branch
    %37 = sbr.rel (0) target = $region45
  $region44: #{neural_network_forward.1} parent=0 // pred_region
    _
  $region45: #{neural_network_forward.1} parent=0 // pred_fallthru
    _
  %v39 = vld [vmem:[%s0] sm:$0xff]
  %v40 = vld [vmem:[%s0 + $0x8] sm:$0xff]
  %v41 = vld [vmem:[%s0 + $0x10] sm:$0xff]
  %v42 = vld [vmem:[%s0 + $0x18] sm:$0xff]
  %v43 = vld [vmem:[%s0 + $0x20] sm:$0xff]
  %v44 = vld [vmem:[%s0 + $0x28] sm:$0xff]
  %v45 = vld [vmem:[%s0 + $0x30] sm:$0xff]
  %v46 = vld [vmem:[%s0 + $0x38] sm:$0xff]
  %v47 = vld [vmem:[%s0 + $0x40] sm:$0xff]
  %v48 = vld [vmem:[%s0 + $0x48] sm:$0xff]
  %v49 = vld [vmem:[%s0 + $0x50] sm:$0xff]
  %v50 = vld [vmem:[%s0 + $0x58] sm:$0xff]
  %v51 = vld [vmem:[%s0 + $0x60] sm:$0xff]
  %v52 = vld [vmem:[%s0 + $0x68] sm:$0xff]
  %v53 = vld [vmem:[%s0 + $0x70] sm:$0xff]
  %v54 = vld [vmem:[%s0 + $0x78] sm:$0xff]
  %v55 = vpack.c.bf16 %v40, %v39
  %v56 = vpack.c.bf16 %v42, %v41
  %v57 = vpack.c.bf16 %v44, %v43
  %v58 = vpack.c.bf16 %v46, %v45
  %v59 = vpack.c.bf16 %v48, %v47
  %v60 = vpack.c.bf16 %v50, %v49
  %v61 = vpack.c.bf16 %v52, %v51
  %v62 = vpack.c.bf16 %v54, %v53
  %v63 = vld [vmem:[%s1] sm:$0xf]
  %v64 = vld [vmem:[%s1 + $0x4] sm:$0xf]
  %v65 = vld [vmem:[%s1 + $0x8] sm:$0xf]
  %v66 = vld [vmem:[%s1 + $0xc] sm:$0xf]
  %v67 = vld [vmem:[%s1 + $0x10] sm:$0xf]
  %v68 = vld [vmem:[%s1 + $0x14] sm:$0xf]
  %v69 = vld [vmem:[%s1 + $0x18] sm:$0xf]
  %v70 = vld [vmem:[%s1 + $0x1c] sm:$0xf]
  %v71 = vld [vmem:[%s2] sm:$0xff]
  %v72 = vld [vmem:[%s2 + $0x8] sm:$0xff]
  %v73 = vld [vmem:[%s2 + $0x10] sm:$0xff]
  %v74 = vld [vmem:[%s2 + $0x18] sm:$0xff]
  %v75 = vld [vmem:[%s2 + $0x20] sm:$0xff]
  %v76 = vld [vmem:[%s2 + $0x28] sm:$0xff]
  %v77 = vld [vmem:[%s2 + $0x30] sm:$0xff]
  %v78 = vld [vmem:[%s2 + $0x38] sm:$0xff]
  %80 = vset.pattern.permute.xlu0 0
  %81 = vperm.xlu0 %80, %v71
  %v82 = vpop.permute.xlu0 %81
  %85 = vset.pattern.permute.xlu0 0
  %86 = vperm.xlu0 %85, %v72
  %v87 = vpop.permute.xlu0 %86
  %90 = vset.pattern.permute.xlu0 0
  %91 = vperm.xlu0 %90, %v73
  %v92 = vpop.permute.xlu0 %91
  %95 = vset.pattern.permute.xlu0 0
  %96 = vperm.xlu0 %95, %v74
  %v97 = vpop.permute.xlu0 %96
  %100 = vset.pattern.permute.xlu0 0
  %101 = vperm.xlu0 %100, %v75
  %v102 = vpop.permute.xlu0 %101
  %105 = vset.pattern.permute.xlu0 0
  %106 = vperm.xlu0 %105, %v76
  %v107 = vpop.permute.xlu0 %106
  %110 = vset.pattern.permute.xlu0 0
  %111 = vperm.xlu0 %110, %v77
  %v112 = vpop.permute.xlu0 %111
  %115 = vset.pattern.permute.xlu0 0
  %116 = vperm.xlu0 %115, %v78
  %v117 = vpop.permute.xlu0 %116
  %v127 = vunpack.c.l.b16 %v63
  %v128 = vunpack.c.l.b16 %v64
  %v129 = vunpack.c.l.b16 %v65
  %v130 = vunpack.c.l.b16 %v66
  %v131 = vunpack.c.l.b16 %v67
  %v132 = vunpack.c.l.b16 %v68
  %v133 = vunpack.c.l.b16 %v69
  %v134 = vunpack.c.l.b16 %v70
  %v135 = vpack.c.b16 %v128, %v127
  %v136 = vpack.c.b16 %v130, %v129
  %v137 = vpack.c.b16 %v132, %v131
  %v138 = vpack.c.b16 %v134, %v133
  %vm139 = vcmask 261120
  %v141 = vsel %vm139, %v135, 0
  %v144 = vsel %vm139, %v136, 0
  %v147 = vsel %vm139, %v137, 0
  %v150 = vsel %vm139, %v138, 0
  %v153 = vsel %vm139, %v55, 0
  %v156 = vsel %vm139, %v56, 0
  %v159 = vsel %vm139, %v57, 0
  %v162 = vsel %vm139, %v58, 0
  %v165 = vsel %vm139, %v59, 0
  %v168 = vsel %vm139, %v60, 0
  %v171 = vsel %vm139, %v61, 0
  %v174 = vsel %vm139, %v62, 0
  %176 = vmatprep.subr.bf16.mxu0 0
  %177 = vmatpush1.bf16.xpose.msra.mxu0 %v153
  %178 = vmatprep.subr.bf16.mxu0 0
  %179 = vmatpush1.bf16.xpose.msra.mxu0 %v156
  %180 = vmatprep.subr.bf16.mxu0 0
  %181 = vmatpush1.bf16.xpose.msra.mxu0 %v159
  %182 = vmatprep.subr.bf16.mxu0 0
  %183 = vmatpush1.bf16.xpose.msra.mxu0 %v162
  %184 = vmatprep.subr.bf16.mxu0 0
  %185 = vmatpush1.bf16.xpose.msra.mxu0 %v165
  %186 = vmatprep.subr.bf16.mxu0 0
  %187 = vmatpush1.bf16.xpose.msra.mxu0 %v168
  %188 = vmatprep.subr.bf16.mxu0 0
  %189 = vmatpush1.bf16.xpose.msra.mxu0 %v171
  %190 = vmatprep.subr.bf16.mxu0 0
  %191 = vmatpush1.bf16.xpose.msra.mxu0 %v174
  %192 = vmatprep.subr.bf16.mxu0 0
  %193 = vmatpush1.bf16.xpose.msra.mxu0 0
  %194 = vmatprep.subr.bf16.mxu0 0
  %195 = vmatpush1.bf16.xpose.msra.mxu0 0
  %196 = vmatprep.subr.bf16.mxu0 0
  %197 = vmatpush1.bf16.xpose.msra.mxu0 0
  %198 = vmatprep.subr.bf16.mxu0 0
  %199 = vmatpush1.bf16.xpose.msra.mxu0 0
  %200 = vmatprep.subr.bf16.mxu0 0
  %201 = vmatpush1.bf16.xpose.msra.mxu0 0
  %202 = vmatprep.subr.bf16.mxu0 0
  %203 = vmatpush1.bf16.xpose.msra.mxu0 0
  %204 = vmatprep.subr.bf16.mxu0 0
  %205 = vmatpush1.bf16.xpose.msra.mxu0 0
  %206 = vmatprep.subr.bf16.mxu0 0
  %207 = vmatpush1.bf16.xpose.msra.mxu0 0
  %208 = vmatprep.mubr.bf16.mxu0 0
  %209 = vmatmul.mubr.bf16.gmra.mrb[0].mxu0 %v141
  %v210 = vpop.f32.mrb[0].mxu0
  %v211 = vadd.f32 %v82, %v210
  %v212 = vpop.f32.mrb[0].mxu0
  %v213 = vpop.f32.mrb[0].mxu0
  %v214 = vadd.f32 %v87, %v213
  %v215 = vpop.f32.mrb[0].mxu0
  %216 = vmatprep.mubr.bf16.mxu0 0
  %217 = vmatmul.mubr.bf16.gmra.mrb[0].mxu0 %v144
  %v218 = vpop.f32.mrb[0].mxu0
  %v219 = vadd.f32 %v92, %v218
  %v220 = vpop.f32.mrb[0].mxu0
  %v221 = vpop.f32.mrb[0].mxu0
  %v222 = vadd.f32 %v97, %v221
  %v223 = vpop.f32.mrb[0].mxu0
  %224 = vmatprep.mubr.bf16.mxu0 0
  %225 = vmatmul.mubr.bf16.gmra.mrb[0].mxu0 %v147
  %v226 = vpop.f32.mrb[0].mxu0
  %v227 = vadd.f32 %v102, %v226
  %v228 = vpop.f32.mrb[0].mxu0
  %v229 = vpop.f32.mrb[0].mxu0
  %v230 = vadd.f32 %v107, %v229
  %v231 = vpop.f32.mrb[0].mxu0
  %232 = vmatprep.mubr.bf16.mxu0 0
  %233 = vmatmul.mubr.bf16.gmra.mrb[0].mxu0 %v150
  %v234 = vpop.f32.mrb[0].mxu0
  %v235 = vadd.f32 %v112, %v234
  %v236 = vpop.f32.mrb[0].mxu0
  %v237 = vpop.f32.mrb[0].mxu0
  %v238 = vadd.f32 %v117, %v237
  %v239 = vpop.f32.mrb[0].mxu0
  %240 = vdwg.mxu0
  %v241 = vmax.f32 %v211, 0.0
  %v242 = vmax.f32 %v214, 0.0
  %v243 = vmax.f32 %v219, 0.0
  %v244 = vmax.f32 %v222, 0.0
  %v245 = vmax.f32 %v227, 0.0
  %v246 = vmax.f32 %v230, 0.0
  %v247 = vmax.f32 %v235, 0.0
  %v248 = vmax.f32 %v238, 0.0
  %v249 = vpack.c.bf16 %v242, %v241
  %v250 = vpack.c.bf16 %v244, %v243
  %v251 = vpack.c.bf16 %v246, %v245
  %v252 = vpack.c.bf16 %v248, %v247
  %v253 = vld [vmem:[%s3] sm:$0xf]
  %v254 = vld [vmem:[%s3 + $0x4] sm:$0xf]
  %v255 = vld [vmem:[%s3 + $0x8] sm:$0xf]
  %v256 = vld [vmem:[%s3 + $0xc] sm:$0xf]
  %v257 = vld [vmem:[%s3 + $0x10] sm:$0xf]
  %v258 = vld [vmem:[%s3 + $0x14] sm:$0xf]
  %v259 = vld [vmem:[%s3 + $0x18] sm:$0xf]
  %v260 = vld [vmem:[%s3 + $0x1c] sm:$0xf]
  %v261 = vld [vmem:[%s4] sm:$0xff]
  %v262 = vld [vmem:[%s4 + $0x8] sm:$0xff]
  %v263 = vld [vmem:[%s4 + $0x10] sm:$0xff]
  %v264 = vld [vmem:[%s4 + $0x18] sm:$0xff]
  %v265 = vld [vmem:[%s4 + $0x20] sm:$0xff]
  %v266 = vld [vmem:[%s4 + $0x28] sm:$0xff]
  %v267 = vld [vmem:[%s4 + $0x30] sm:$0xff]
  %v268 = vld [vmem:[%s4 + $0x38] sm:$0xff]
  %270 = vset.pattern.permute.xlu0 0
  %271 = vperm.xlu0 %270, %v261
  %v272 = vpop.permute.xlu0 %271
  %275 = vset.pattern.permute.xlu0 0
  %276 = vperm.xlu0 %275, %v262
  %v277 = vpop.permute.xlu0 %276
  %280 = vset.pattern.permute.xlu0 0
  %281 = vperm.xlu0 %280, %v263
  %v282 = vpop.permute.xlu0 %281
  %285 = vset.pattern.permute.xlu0 0
  %286 = vperm.xlu0 %285, %v264
  %v287 = vpop.permute.xlu0 %286
  %290 = vset.pattern.permute.xlu0 0
  %291 = vperm.xlu0 %290, %v265
  %v292 = vpop.permute.xlu0 %291
  %295 = vset.pattern.permute.xlu0 0
  %296 = vperm.xlu0 %295, %v266
  %v297 = vpop.permute.xlu0 %296
  %300 = vset.pattern.permute.xlu0 0
  %301 = vperm.xlu0 %300, %v267
  %v302 = vpop.permute.xlu0 %301
  %305 = vset.pattern.permute.xlu0 0
  %306 = vperm.xlu0 %305, %v268
  %v307 = vpop.permute.xlu0 %306
  %v317 = vunpack.c.l.b16 %v253
  %v318 = vunpack.c.l.b16 %v254
  %v319 = vunpack.c.l.b16 %v255
  %v320 = vunpack.c.l.b16 %v256
  %v321 = vunpack.c.l.b16 %v257
  %v322 = vunpack.c.l.b16 %v258
  %v323 = vunpack.c.l.b16 %v259
  %v324 = vunpack.c.l.b16 %v260
  %v325 = vpack.c.b16 %v318, %v317
  %v326 = vpack.c.b16 %v320, %v319
  %v327 = vpack.c.b16 %v322, %v321
  %v328 = vpack.c.b16 %v324, %v323
  %vm329 = vcmask 523264
  %v331 = vsel %vm329, %v325, 0
  %v334 = vsel %vm329, %v326, 0
  %v337 = vsel %vm329, %v327, 0
  %v340 = vsel %vm329, %v328, 0
  %342 = vmatprep.subr.bf16.mxu0 0
  %343 = vmatpush1.bf16.msra.mxu0 %v249
  %344 = vmatprep.subr.bf16.mxu0 0
  %345 = vmatpush1.bf16.msra.mxu0 %v250
  %346 = vmatprep.subr.bf16.mxu0 0
  %347 = vmatpush1.bf16.msra.mxu0 %v251
  %348 = vmatprep.subr.bf16.mxu0 0
  %349 = vmatpush1.bf16.msra.mxu0 %v252
  %350 = vmatprep.subr.bf16.mxu0 0
  %351 = vmatpush1.bf16.msra.mxu0 0
  %352 = vmatprep.subr.bf16.mxu0 0
  %353 = vmatpush1.bf16.msra.mxu0 0
  %354 = vmatprep.subr.bf16.mxu0 0
  %355 = vmatpush1.bf16.msra.mxu0 0
  %356 = vmatprep.subr.bf16.mxu0 0
  %357 = vmatpush1.bf16.msra.mxu0 0
  %358 = vmatprep.subr.bf16.mxu0 0
  %359 = vmatpush1.bf16.msra.mxu0 0
  %360 = vmatprep.subr.bf16.mxu0 0
  %361 = vmatpush1.bf16.msra.mxu0 0
  %362 = vmatprep.subr.bf16.mxu0 0
  %363 = vmatpush1.bf16.msra.mxu0 0
  %364 = vmatprep.subr.bf16.mxu0 0
  %365 = vmatpush1.bf16.msra.mxu0 0
  %366 = vmatprep.subr.bf16.mxu0 0
  %367 = vmatpush1.bf16.msra.mxu0 0
  %368 = vmatprep.subr.bf16.mxu0 0
  %369 = vmatpush1.bf16.msra.mxu0 0
  %370 = vmatprep.subr.bf16.mxu0 0
  %371 = vmatpush1.bf16.msra.mxu0 0
  %372 = vmatprep.subr.bf16.mxu0 0
  %373 = vmatpush1.bf16.msra.mxu0 0
  %374 = vmatprep.mubr.bf16.mxu0 0
  %375 = vmatmul.mubr.bf16.gmra.mrb[0].mxu0 %v331
  %v376 = vpop.f32.mrb[0].mxu0
  %v377 = vadd.f32 %v272, %v376
  %v378 = vpop.f32.mrb[0].mxu0
  %v379 = vpop.f32.mrb[0].mxu0
  %v380 = vadd.f32 %v277, %v379
  %v381 = vpop.f32.mrb[0].mxu0
  %382 = vmatprep.mubr.bf16.mxu0 0
  %383 = vmatmul.mubr.bf16.gmra.mrb[0].mxu0 %v334
  %v384 = vpop.f32.mrb[0].mxu0
  %v385 = vadd.f32 %v282, %v384
  %v386 = vpop.f32.mrb[0].mxu0
  %v387 = vpop.f32.mrb[0].mxu0
  %v388 = vadd.f32 %v287, %v387
  %v389 = vpop.f32.mrb[0].mxu0
  %390 = vmatprep.mubr.bf16.mxu0 0
  %391 = vmatmul.mubr.bf16.gmra.mrb[0].mxu0 %v337
  %v392 = vpop.f32.mrb[0].mxu0
  %v393 = vadd.f32 %v292, %v392
  %v394 = vpop.f32.mrb[0].mxu0
  %v395 = vpop.f32.mrb[0].mxu0
  %v396 = vadd.f32 %v297, %v395
  %v397 = vpop.f32.mrb[0].mxu0
  %398 = vmatprep.mubr.bf16.mxu0 0
  %399 = vmatmul.mubr.bf16.gmra.mrb[0].mxu0 %v340
  %v400 = vpop.f32.mrb[0].mxu0
  %v401 = vadd.f32 %v302, %v400
  %v402 = vpop.f32.mrb[0].mxu0
  %v403 = vpop.f32.mrb[0].mxu0
  %v404 = vadd.f32 %v307, %v403
  %v405 = vpop.f32.mrb[0].mxu0
  %406 = vdwg.mxu0
  %v407 = vmax.f32 %v377, 0.0
  %v408 = vmax.f32 %v380, 0.0
  %v409 = vmax.f32 %v385, 0.0
  %v410 = vmax.f32 %v388, 0.0
  %v411 = vmax.f32 %v393, 0.0
  %v412 = vmax.f32 %v396, 0.0
  %v413 = vmax.f32 %v401, 0.0
  %v414 = vmax.f32 %v404, 0.0
  %v415 = vpack.c.bf16 %v408, %v407
  %v416 = vpack.c.bf16 %v410, %v409
  %v417 = vpack.c.bf16 %v412, %v411
  %v418 = vpack.c.bf16 %v414, %v413
  %v419 = vld [vmem:[%s5] sm:$0xf]
  %v420 = vld [vmem:[%s5 + $0x4] sm:$0xf]
  %v421 = vld [vmem:[%s5 + $0x8] sm:$0xf]
  %v422 = vld [vmem:[%s5 + $0xc] sm:$0xf]
  %v423 = vld [vmem:[%s5 + $0x10] sm:$0xf]
  %v424 = vld [vmem:[%s5 + $0x14] sm:$0xf]
  %v425 = vld [vmem:[%s5 + $0x18] sm:$0xf]
  %v426 = vld [vmem:[%s5 + $0x1c] sm:$0xf]
  %v427 = vld [vmem:[%s6] sm:$0xff]
  %v428 = vld [vmem:[%s6 + $0x8] sm:$0xff]
  %v429 = vld [vmem:[%s6 + $0x10] sm:$0xff]
  %v430 = vld [vmem:[%s6 + $0x18] sm:$0xff]
  %v431 = vld [vmem:[%s6 + $0x20] sm:$0xff]
  %v432 = vld [vmem:[%s6 + $0x28] sm:$0xff]
  %v433 = vld [vmem:[%s6 + $0x30] sm:$0xff]
  %v434 = vld [vmem:[%s6 + $0x38] sm:$0xff]
  %436 = vset.pattern.permute.xlu0 0
  %437 = vperm.xlu0 %436, %v427
  %v438 = vpop.permute.xlu0 %437
  %441 = vset.pattern.permute.xlu0 0
  %442 = vperm.xlu0 %441, %v428
  %v443 = vpop.permute.xlu0 %442
  %446 = vset.pattern.permute.xlu0 0
  %447 = vperm.xlu0 %446, %v429
  %v448 = vpop.permute.xlu0 %447
  %451 = vset.pattern.permute.xlu0 0
  %452 = vperm.xlu0 %451, %v430
  %v453 = vpop.permute.xlu0 %452
  %456 = vset.pattern.permute.xlu0 0
  %457 = vperm.xlu0 %456, %v431
  %v458 = vpop.permute.xlu0 %457
  %461 = vset.pattern.permute.xlu0 0
  %462 = vperm.xlu0 %461, %v432
  %v463 = vpop.permute.xlu0 %462
  %466 = vset.pattern.permute.xlu0 0
  %467 = vperm.xlu0 %466, %v433
  %v468 = vpop.permute.xlu0 %467
  %471 = vset.pattern.permute.xlu0 0
  %472 = vperm.xlu0 %471, %v434
  %v473 = vpop.permute.xlu0 %472
  %v483 = vunpack.c.l.b16 %v419
  %v484 = vunpack.c.l.b16 %v420
  %v485 = vunpack.c.l.b16 %v421
  %v486 = vunpack.c.l.b16 %v422
  %v487 = vunpack.c.l.b16 %v423
  %v488 = vunpack.c.l.b16 %v424
  %v489 = vunpack.c.l.b16 %v425
  %v490 = vunpack.c.l.b16 %v426
  %v491 = vpack.c.b16 %v484, %v483
  %v492 = vpack.c.b16 %v486, %v485
  %v493 = vpack.c.b16 %v488, %v487
  %v494 = vpack.c.b16 %v490, %v489
  %v496 = vsel %vm329, %v491, 0
  %v499 = vsel %vm329, %v492, 0
  %v502 = vsel %vm329, %v493, 0
  %v505 = vsel %vm329, %v494, 0
  %507 = vmatprep.subr.bf16.mxu0 0
  %508 = vmatpush1.bf16.msra.mxu0 %v415
  %509 = vmatprep.subr.bf16.mxu0 0
  %510 = vmatpush1.bf16.msra.mxu0 %v416
  %511 = vmatprep.subr.bf16.mxu0 0
  %512 = vmatpush1.bf16.msra.mxu0 %v417
  %513 = vmatprep.subr.bf16.mxu0 0
  %514 = vmatpush1.bf16.msra.mxu0 %v418
  %515 = vmatprep.subr.bf16.mxu0 0
  %516 = vmatpush1.bf16.msra.mxu0 0
  %517 = vmatprep.subr.bf16.mxu0 0
  %518 = vmatpush1.bf16.msra.mxu0 0
  %519 = vmatprep.subr.bf16.mxu0 0
  %520 = vmatpush1.bf16.msra.mxu0 0
  %521 = vmatprep.subr.bf16.mxu0 0
  %522 = vmatpush1.bf16.msra.mxu0 0
  %523 = vmatprep.subr.bf16.mxu0 0
  %524 = vmatpush1.bf16.msra.mxu0 0
  %525 = vmatprep.subr.bf16.mxu0 0
  %526 = vmatpush1.bf16.msra.mxu0 0
  %527 = vmatprep.subr.bf16.mxu0 0
  %528 = vmatpush1.bf16.msra.mxu0 0
  %529 = vmatprep.subr.bf16.mxu0 0
  %530 = vmatpush1.bf16.msra.mxu0 0
  %531 = vmatprep.subr.bf16.mxu0 0
  %532 = vmatpush1.bf16.msra.mxu0 0
  %533 = vmatprep.subr.bf16.mxu0 0
  %534 = vmatpush1.bf16.msra.mxu0 0
  %535 = vmatprep.subr.bf16.mxu0 0
  %536 = vmatpush1.bf16.msra.mxu0 0
  %537 = vmatprep.subr.bf16.mxu0 0
  %538 = vmatpush1.bf16.msra.mxu0 0
  %539 = vmatprep.mubr.bf16.mxu0 0
  %540 = vmatmul.mubr.bf16.gmra.mrb[0].mxu0 %v496
  %v541 = vpop.f32.mrb[0].mxu0
  %v542 = vadd.f32 %v438, %v541
  %v543 = vpop.f32.mrb[0].mxu0
  %v544 = vpop.f32.mrb[0].mxu0
  %v545 = vadd.f32 %v443, %v544
  %v546 = vpop.f32.mrb[0].mxu0
  %547 = vmatprep.mubr.bf16.mxu0 0
  %548 = vmatmul.mubr.bf16.gmra.mrb[0].mxu0 %v499
  %v549 = vpop.f32.mrb[0].mxu0
  %v550 = vadd.f32 %v448, %v549
  %v551 = vpop.f32.mrb[0].mxu0
  %v552 = vpop.f32.mrb[0].mxu0
  %v553 = vadd.f32 %v453, %v552
  %v554 = vpop.f32.mrb[0].mxu0
  %555 = vmatprep.mubr.bf16.mxu0 0
  %556 = vmatmul.mubr.bf16.gmra.mrb[0].mxu0 %v502
  %v557 = vpop.f32.mrb[0].mxu0
  %v558 = vadd.f32 %v458, %v557
  %v559 = vpop.f32.mrb[0].mxu0
  %v560 = vpop.f32.mrb[0].mxu0
  %v561 = vadd.f32 %v463, %v560
  %v562 = vpop.f32.mrb[0].mxu0
  %563 = vmatprep.mubr.bf16.mxu0 0
  %564 = vmatmul.mubr.bf16.gmra.mrb[0].mxu0 %v505
  %v565 = vpop.f32.mrb[0].mxu0
  %v566 = vadd.f32 %v468, %v565
  %v567 = vpop.f32.mrb[0].mxu0
  %v568 = vpop.f32.mrb[0].mxu0
  %v569 = vadd.f32 %v473, %v568
  %v570 = vpop.f32.mrb[0].mxu0
  %571 = vdwg.mxu0
  %v572 = vmax.f32 %v542, 0.0
  %v573 = vmax.f32 %v545, 0.0
  %v574 = vmax.f32 %v550, 0.0
  %v575 = vmax.f32 %v553, 0.0
  %v576 = vmax.f32 %v558, 0.0
  %v577 = vmax.f32 %v561, 0.0
  %v578 = vmax.f32 %v566, 0.0
  %v579 = vmax.f32 %v569, 0.0
  %v580 = vpack.c.bf16 %v573, %v572
  %v581 = vpack.c.bf16 %v575, %v574
  %v582 = vpack.c.bf16 %v577, %v576
  %v583 = vpack.c.bf16 %v579, %v578
  %v584 = vld [vmem:[%s7] sm:$0xf]
  %v585 = vld [vmem:[%s7 + $0x4] sm:$0xf]
  %v586 = vld [vmem:[%s7 + $0x8] sm:$0xf]
  %v587 = vld [vmem:[%s7 + $0xc] sm:$0xf]
  %v588 = vld [vmem:[%s7 + $0x10] sm:$0xf]
  %v589 = vld [vmem:[%s7 + $0x14] sm:$0xf]
  %v590 = vld [vmem:[%s7 + $0x18] sm:$0xf]
  %v591 = vld [vmem:[%s7 + $0x1c] sm:$0xf]
  %v592 = vld [vmem:[%s8] sm:$0xff]
  %v593 = vld [vmem:[%s8 + $0x8] sm:$0xff]
  %v594 = vld [vmem:[%s8 + $0x10] sm:$0xff]
  %v595 = vld [vmem:[%s8 + $0x18] sm:$0xff]
  %v596 = vld [vmem:[%s8 + $0x20] sm:$0xff]
  %v597 = vld [vmem:[%s8 + $0x28] sm:$0xff]
  %v598 = vld [vmem:[%s8 + $0x30] sm:$0xff]
  %v599 = vld [vmem:[%s8 + $0x38] sm:$0xff]
  %601 = vset.pattern.permute.xlu0 0
  %602 = vperm.xlu0 %601, %v592
  %v603 = vpop.permute.xlu0 %602
  %606 = vset.pattern.permute.xlu0 0
  %607 = vperm.xlu0 %606, %v593
  %v608 = vpop.permute.xlu0 %607
  %611 = vset.pattern.permute.xlu0 0
  %612 = vperm.xlu0 %611, %v594
  %v613 = vpop.permute.xlu0 %612
  %616 = vset.pattern.permute.xlu0 0
  %617 = vperm.xlu0 %616, %v595
  %v618 = vpop.permute.xlu0 %617
  %621 = vset.pattern.permute.xlu0 0
  %622 = vperm.xlu0 %621, %v596
  %v623 = vpop.permute.xlu0 %622
  %626 = vset.pattern.permute.xlu0 0
  %627 = vperm.xlu0 %626, %v597
  %v628 = vpop.permute.xlu0 %627
  %631 = vset.pattern.permute.xlu0 0
  %632 = vperm.xlu0 %631, %v598
  %v633 = vpop.permute.xlu0 %632
  %636 = vset.pattern.permute.xlu0 0
  %637 = vperm.xlu0 %636, %v599
  %v638 = vpop.permute.xlu0 %637
  %v648 = vunpack.c.l.b16 %v584
  %v649 = vunpack.c.l.b16 %v585
  %v650 = vunpack.c.l.b16 %v586
  %v651 = vunpack.c.l.b16 %v587
  %v652 = vunpack.c.l.b16 %v588
  %v653 = vunpack.c.l.b16 %v589
  %v654 = vunpack.c.l.b16 %v590
  %v655 = vunpack.c.l.b16 %v591
  %v656 = vpack.c.b16 %v649, %v648
  %v657 = vpack.c.b16 %v651, %v650
  %v658 = vpack.c.b16 %v653, %v652
  %v659 = vpack.c.b16 %v655, %v654
  %v661 = vsel %vm329, %v656, 0
  %v664 = vsel %vm329, %v657, 0
  %v667 = vsel %vm329, %v658, 0
  %v670 = vsel %vm329, %v659, 0
  %672 = vmatprep.subr.bf16.mxu0 0
  %673 = vmatpush1.bf16.msra.mxu0 %v580
  %674 = vmatprep.subr.bf16.mxu0 0
  %675 = vmatpush1.bf16.msra.mxu0 %v581
  %676 = vmatprep.subr.bf16.mxu0 0
  %677 = vmatpush1.bf16.msra.mxu0 %v582
  %678 = vmatprep.subr.bf16.mxu0 0
  %679 = vmatpush1.bf16.msra.mxu0 %v583
  %680 = vmatprep.subr.bf16.mxu0 0
  %681 = vmatpush1.bf16.msra.mxu0 0
  %682 = vmatprep.subr.bf16.mxu0 0
  %683 = vmatpush1.bf16.msra.mxu0 0
  %684 = vmatprep.subr.bf16.mxu0 0
  %685 = vmatpush1.bf16.msra.mxu0 0
  %686 = vmatprep.subr.bf16.mxu0 0
  %687 = vmatpush1.bf16.msra.mxu0 0
  %688 = vmatprep.subr.bf16.mxu0 0
  %689 = vmatpush1.bf16.msra.mxu0 0
  %690 = vmatprep.subr.bf16.mxu0 0
  %691 = vmatpush1.bf16.msra.mxu0 0
  %692 = vmatprep.subr.bf16.mxu0 0
  %693 = vmatpush1.bf16.msra.mxu0 0
  %694 = vmatprep.subr.bf16.mxu0 0
  %695 = vmatpush1.bf16.msra.mxu0 0
  %696 = vmatprep.subr.bf16.mxu0 0
  %697 = vmatpush1.bf16.msra.mxu0 0
  %698 = vmatprep.subr.bf16.mxu0 0
  %699 = vmatpush1.bf16.msra.mxu0 0
  %700 = vmatprep.subr.bf16.mxu0 0
  %701 = vmatpush1.bf16.msra.mxu0 0
  %702 = vmatprep.subr.bf16.mxu0 0
  %703 = vmatpush1.bf16.msra.mxu0 0
  %704 = vmatprep.mubr.bf16.mxu0 0
  %705 = vmatmul.mubr.bf16.gmra.mrb[0].mxu0 %v661
  %v706 = vpop.f32.mrb[0].mxu0
  %v707 = vadd.f32 %v603, %v706
  %v708 = vpop.f32.mrb[0].mxu0
  %v709 = vpop.f32.mrb[0].mxu0
  %v710 = vadd.f32 %v608, %v709
  %v711 = vpop.f32.mrb[0].mxu0
  %712 = vmatprep.mubr.bf16.mxu0 0
  %713 = vmatmul.mubr.bf16.gmra.mrb[0].mxu0 %v664
  %v714 = vpop.f32.mrb[0].mxu0
  %v715 = vadd.f32 %v613, %v714
  %v716 = vpop.f32.mrb[0].mxu0
  %v717 = vpop.f32.mrb[0].mxu0
  %v718 = vadd.f32 %v618, %v717
  %v719 = vpop.f32.mrb[0].mxu0
  %720 = vmatprep.mubr.bf16.mxu0 0
  %721 = vmatmul.mubr.bf16.gmra.mrb[0].mxu0 %v667
  %v722 = vpop.f32.mrb[0].mxu0
  %v723 = vadd.f32 %v623, %v722
  %v724 = vpop.f32.mrb[0].mxu0
  %v725 = vpop.f32.mrb[0].mxu0
  %v726 = vadd.f32 %v628, %v725
  %v727 = vpop.f32.mrb[0].mxu0
  %728 = vmatprep.mubr.bf16.mxu0 0
  %729 = vmatmul.mubr.bf16.gmra.mrb[0].mxu0 %v670
  %v730 = vpop.f32.mrb[0].mxu0
  %v731 = vadd.f32 %v633, %v730
  %v732 = vpop.f32.mrb[0].mxu0
  %v733 = vpop.f32.mrb[0].mxu0
  %v734 = vadd.f32 %v638, %v733
  %v735 = vpop.f32.mrb[0].mxu0
  %736 = vdwg.mxu0
  %v737 = vmax.f32 %v707, 0.0
  %v738 = vmax.f32 %v710, 0.0
  %v739 = vmax.f32 %v715, 0.0
  %v740 = vmax.f32 %v718, 0.0
  %v741 = vmax.f32 %v723, 0.0
  %v742 = vmax.f32 %v726, 0.0
  %v743 = vmax.f32 %v731, 0.0
  %v744 = vmax.f32 %v734, 0.0
  %v745 = vpack.c.bf16 %v738, %v737
  %v746 = vpack.c.bf16 %v740, %v739
  %v747 = vpack.c.bf16 %v742, %v741
  %v748 = vpack.c.bf16 %v744, %v743
  %v749 = vld [vmem:[%s9] sm:$0xf]
  %v750 = vld [vmem:[%s9 + $0x4] sm:$0xf]
  %v751 = vld [vmem:[%s10] sm:$0xff]
  %v752 = vld [vmem:[%s10 + $0x8] sm:$0xff]
  %754 = vset.pattern.permute.xlu0 0
  %755 = vperm.xlu0 %754, %v751
  %v756 = vpop.permute.xlu0 %755
  %759 = vset.pattern.permute.xlu0 0
  %760 = vperm.xlu0 %759, %v752
  %v761 = vpop.permute.xlu0 %760
  %v765 = vunpack.c.l.b16 %v749
  %v766 = vunpack.c.l.b16 %v750
  %v767 = vpack.c.b16 %v766, %v765
  %v769 = vsel %vm329, %v767, 0
  %771 = vmatprep.subr.bf16.mxu0 0
  %772 = vmatpush1.bf16.msra.mxu0 %v745
  %773 = vmatprep.subr.bf16.mxu0 0
  %774 = vmatpush1.bf16.msra.mxu0 %v746
  %775 = vmatprep.subr.bf16.mxu0 0
  %776 = vmatpush1.bf16.msra.mxu0 %v747
  %777 = vmatprep.subr.bf16.mxu0 0
  %778 = vmatpush1.bf16.msra.mxu0 %v748
  %779 = vmatprep.subr.bf16.mxu0 0
  %780 = vmatpush1.bf16.msra.mxu0 0
  %781 = vmatprep.subr.bf16.mxu0 0
  %782 = vmatpush1.bf16.msra.mxu0 0
  %783 = vmatprep.subr.bf16.mxu0 0
  %784 = vmatpush1.bf16.msra.mxu0 0
  %785 = vmatprep.subr.bf16.mxu0 0
  %786 = vmatpush1.bf16.msra.mxu0 0
  %787 = vmatprep.subr.bf16.mxu0 0
  %788 = vmatpush1.bf16.msra.mxu0 0
  %789 = vmatprep.subr.bf16.mxu0 0
  %790 = vmatpush1.bf16.msra.mxu0 0
  %791 = vmatprep.subr.bf16.mxu0 0
  %792 = vmatpush1.bf16.msra.mxu0 0
  %793 = vmatprep.subr.bf16.mxu0 0
  %794 = vmatpush1.bf16.msra.mxu0 0
  %795 = vmatprep.subr.bf16.mxu0 0
  %796 = vmatpush1.bf16.msra.mxu0 0
  %797 = vmatprep.subr.bf16.mxu0 0
  %798 = vmatpush1.bf16.msra.mxu0 0
  %799 = vmatprep.subr.bf16.mxu0 0
  %800 = vmatpush1.bf16.msra.mxu0 0
  %801 = vmatprep.subr.bf16.mxu0 0
  %802 = vmatpush1.bf16.msra.mxu0 0
  %803 = vmatprep.mubr.bf16.mxu0 0
  %804 = vmatmul.mubr.bf16.gmra.mrb[0].mxu0 %v769
  %v805 = vpop.f32.mrb[0].mxu0
  %v806 = vadd.f32 %v756, %v805
  %v807 = vpop.f32.mrb[0].mxu0
  %v808 = vpop.f32.mrb[0].mxu0
  %v809 = vadd.f32 %v761, %v808
  %v810 = vpop.f32.mrb[0].mxu0
  %811 = vdwg.mxu0
  %812 = vst [vmem:[%s11] sm:$0xff] %v806
  %813 = vst [vmem:[%s11 + $0x8] sm:$0xff] %v809
  // Predicated region
  $region46: #{neural_network_forward.1} parent=0 // pred_check
    _
  $region47: #{neural_network_forward.1} parent=0 // pred_check_branch
    %815 = sbr.rel (0) target = $region49
  $region48: #{neural_network_forward.1} parent=0 // pred_region
    _
  $region49: #{neural_network_forward.1} parent=0 // pred_fallthru
    _
  // Predicated region
  $region50: #{neural_network_forward.1} parent=0 // pred_check
    _
  $region51: #{neural_network_forward.1} parent=0 // pred_check_branch
    %817 = sbr.rel (0) target = $region53
  $region52: #{neural_network_forward.1} parent=0 // pred_region
    _
  $region53: #{neural_network_forward.1} parent=0 // pred_fallthru
    _

</llo_original>
